<compile_context>
chip_gen: v7x
topology: tpu7x:2x2x1
jax: 0.10.0
libtpu: 0.0.40
codegen_flags: <defaults>
</compile_context>

<pallas_src>
import functools

import jax
import jax.numpy as jnp
from jax.experimental import pallas as pl
from jax.experimental.pallas import tpu as pltpu


def _round_up(n, m):
    return ((n + m - 1) // m) * m


def ffnn_kernel(x_ref, w1_ref, b1_ref, w2t_ref, b2_ref, o_ref):
    d_in = x_ref.shape[1]          # static (= 4)
    d_out = o_ref.shape[1]         # static (= 1)

    x = x_ref[...].astype(jnp.float32)       # (tile_b, d_in)
    w1 = w1_ref[...].astype(jnp.float32)     # (d_in, hidden)  -- hoisted cast
    b1 = b1_ref[...].astype(jnp.float32)     # (1, hidden)
    w2t = w2t_ref[...].astype(jnp.float32)   # (d_out, hidden)
    b2 = b2_ref[...].astype(jnp.float32)     # (1, d_out)

    # fc1 on the VPU: d_in is tiny, so an MXU pass would be almost all padding
    # on the contraction dim.  Statically unrolled broadcast-FMA accumulation
    # over rows of the (already loaded/cast) w1.
    acc = x[:, 0:1] * w1[0:1, :]
    for k in range(1, d_in):
        acc = acc + x[:, k:k + 1] * w1[k:k + 1, :]

    # Single hoisted (1, hidden) bias broadcast + ReLU, f32 on the VPU.
    h = jnp.maximum(acc + b1, 0.0)           # (tile_b, hidden)

    # fc2: only d_out (=1) real output column(s), so each column is a single
    # XLU lane reduction; no MXU pass and no padded output store.
    cols = [jnp.sum(h * w2t[j:j + 1, :], axis=-1, keepdims=True)
            for j in range(d_out)]
    out = cols[0] if d_out == 1 else jnp.concatenate(cols, axis=-1)
    o_ref[...] = (out + b2).astype(o_ref.dtype)


@functools.partial(jax.jit, static_argnames=("tile_b",))
def ffnn_forward(x, w1, b1, w2, b2, *, tile_b=None):
    """x: (B, D_in); w1: (D_in, H); b1: (1, H); w2: (H, D_out); b2: (1, D_out).

    Weights are stored transposed vs. PyTorch (in_features, out_features) so
    the forward pass is relu(x @ W1 + b1) @ W2 + b2.
    """
    B, d_in = x.shape
    hidden = w1.shape[1]
    d_out = w2.shape[1]

    if tile_b is None:
        # <=512 rows per grid step, >=2 steps when possible (megacore on
        # v7x's 2 TCs), multiple of 8 (sublane granularity).
        tile_b = max(8, min(512, _round_up(pl.cdiv(B, 2), 8)))
    assert tile_b % 8 == 0 and tile_b > 0, "tile_b must be a positive multiple of 8"

    # Only pad the batch when B is not a multiple of the chosen tile.
    b_pad = _round_up(B, tile_b)
    x_p = x if b_pad == B else jnp.pad(x, ((0, b_pad - B), (0, 0)))

    # (d_out, hidden): same lane layout as h for the in-kernel lane reduction.
    w2_t = w2.T

    itemsize = jnp.dtype(x.dtype).itemsize
    cost = pl.CostEstimate(
        flops=2 * B * (d_in * hidden + hidden * d_out),
        transcendentals=0,
        bytes_accessed=itemsize * (x.size + w1.size + b1.size + w2.size
                                   + b2.size + B * d_out),
    )

    grid = (b_pad // tile_b,)
    out_p = pl.pallas_call(
        ffnn_kernel,
        out_shape=jax.ShapeDtypeStruct((b_pad, d_out), x.dtype),
        grid=grid,
        in_specs=[
            # x streams through the grid in (tile_b, d_in) tiles.
            pl.BlockSpec((tile_b, d_in), lambda i: (i, 0)),
            # Weights / biases: same (full-array) block every step -> resident
            # in VMEM across grid iterations.
            pl.BlockSpec((d_in, hidden), lambda i: (0, 0)),
            pl.BlockSpec((1, hidden), lambda i: (0, 0)),
            pl.BlockSpec((d_out, hidden), lambda i: (0, 0)),
            pl.BlockSpec((1, d_out), lambda i: (0, 0)),
        ],
        # d_out (=1) equals the full array dim -> legal, and only 4 B/row of
        # real output is ever written back to HBM.
        out_specs=pl.BlockSpec((tile_b, d_out), lambda i: (i, 0)),
        compiler_params=pltpu.CompilerParams(
            dimension_semantics=("parallel",),      # megacore-shard the batch
            vmem_limit_bytes=32 * 1024 * 1024,      # explicit; tiles are tiny
        ),
        cost_estimate=cost,
    )(x_p, w1, b1, w2_t, b2)

    return out_p if b_pad == B else out_p[:B]


def init_linear_params(key, in_features, out_features, dtype=jnp.float32):
    """Mimic torch.nn.Linear default init: U(-1/sqrt(fan_in), 1/sqrt(fan_in))."""
    k_w, k_b = jax.random.split(key)
    bound = 1.0 / (in_features ** 0.5)
    # Stored as (in_features, out_features) == PyTorch weight transposed.
    w = jax.random.uniform(k_w, (in_features, out_features), dtype,
                           minval=-bound, maxval=bound)
    b = jax.random.uniform(k_b, (1, out_features), dtype,
                           minval=-bound, maxval=bound)
    return w, b


if __name__ == "__main__":
    input_dim = 4
    hidden_dim = 32
    output_dim = 1
    batch = 256   # auto tile_b = 128 -> 2 grid steps (one per v7x TC)

    root = jax.random.PRNGKey(0)
    k_x, k_fc1, k_fc2 = jax.random.split(root, 3)

    x = jax.random.normal(k_x, (batch, input_dim), dtype=jnp.float32)
    w1, b1 = init_linear_params(k_fc1, input_dim, hidden_dim)
    w2, b2 = init_linear_params(k_fc2, hidden_dim, output_dim)

    out = ffnn_forward(x, w1, b1, w2, b2)
    out = jax.block_until_ready(out)

    # Pure-JAX reference of the same forward pass.
    ref = jnp.maximum(x @ w1 + b1, 0.0) @ w2 + b2
    assert out.shape == (batch, output_dim), out.shape
    assert jnp.allclose(out, ref, atol=1e-5, rtol=1e-5)

    print("KERNEL_OK")
</pallas_src>

<mosaic_0001>
module attributes {stable_mosaic.version = 11 : i64} {
  func.func @ffnn_kernel(%arg0: i32, %arg1: memref<128x4xf32, #tpu.memory_space<vmem>>, %arg2: memref<4x32xf32, #tpu.memory_space<vmem>>, %arg3: memref<1x32xf32, #tpu.memory_space<vmem>>, %arg4: memref<1x32xf32, #tpu.memory_space<vmem>>, %arg5: memref<1x1xf32, #tpu.memory_space<vmem>>, %arg6: memref<128x1xf32, #tpu.memory_space<vmem>>) attributes {dimension_semantics = [#tpu.dimension_semantics<parallel>], iteration_bounds = array<i64: 2>, scalar_prefetch = 0 : i64, scratch_operands = 0 : i64, tpu.core_type = #tpu.core_type<tc>, window_params = [{transform_indices = @transform_0, window_bounds = array<i64: 128, 4>}, {pipeline_mode = #tpu.pipeline_mode<synchronous>, transform_indices = @transform_1, window_bounds = array<i64: 4, 32>}, {pipeline_mode = #tpu.pipeline_mode<synchronous>, transform_indices = @transform_2, window_bounds = array<i64: 1, 32>}, {pipeline_mode = #tpu.pipeline_mode<synchronous>, transform_indices = @transform_3, window_bounds = array<i64: 1, 32>}, {pipeline_mode = #tpu.pipeline_mode<synchronous>, transform_indices = @transform_4, window_bounds = array<i64: 1, 1>}, {transform_indices = @transform_5, window_bounds = array<i64: 128, 1>}]} {
    %c0 = arith.constant 0 : index
    %c0_0 = arith.constant 0 : index
    %0 = vector.load %arg1[%c0, %c0_0] : memref<128x4xf32, #tpu.memory_space<vmem>>, vector<128x4xf32>
    %c0_1 = arith.constant 0 : index
    %c0_2 = arith.constant 0 : index
    %1 = vector.load %arg2[%c0_1, %c0_2] : memref<4x32xf32, #tpu.memory_space<vmem>>, vector<4x32xf32>
    %c0_3 = arith.constant 0 : index
    %c0_4 = arith.constant 0 : index
    %2 = vector.load %arg3[%c0_3, %c0_4] : memref<1x32xf32, #tpu.memory_space<vmem>>, vector<1x32xf32>
    %c0_5 = arith.constant 0 : index
    %c0_6 = arith.constant 0 : index
    %3 = vector.load %arg4[%c0_5, %c0_6] : memref<1x32xf32, #tpu.memory_space<vmem>>, vector<1x32xf32>
    %c0_7 = arith.constant 0 : index
    %c0_8 = arith.constant 0 : index
    %4 = vector.load %arg5[%c0_7, %c0_8] : memref<1x1xf32, #tpu.memory_space<vmem>>, vector<1x1xf32>
    %5 = vector.extract_strided_slice %0 {offsets = [0, 0], sizes = [128, 1], strides = [1, 1]} : vector<128x4xf32> to vector<128x1xf32>
    %6 = vector.extract_strided_slice %1 {offsets = [0, 0], sizes = [1, 32], strides = [1, 1]} : vector<4x32xf32> to vector<1x32xf32>
    %7 = vector.broadcast %5 : vector<128x1xf32> to vector<128x32xf32>
    %8 = vector.broadcast %6 : vector<1x32xf32> to vector<128x32xf32>
    %9 = arith.mulf %7, %8 : vector<128x32xf32>
    %10 = vector.extract_strided_slice %0 {offsets = [0, 1], sizes = [128, 1], strides = [1, 1]} : vector<128x4xf32> to vector<128x1xf32>
    %11 = vector.extract_strided_slice %1 {offsets = [1, 0], sizes = [1, 32], strides = [1, 1]} : vector<4x32xf32> to vector<1x32xf32>
    %12 = vector.broadcast %10 : vector<128x1xf32> to vector<128x32xf32>
    %13 = vector.broadcast %11 : vector<1x32xf32> to vector<128x32xf32>
    %14 = arith.mulf %12, %13 : vector<128x32xf32>
    %15 = arith.addf %9, %14 : vector<128x32xf32>
    %16 = vector.extract_strided_slice %0 {offsets = [0, 2], sizes = [128, 1], strides = [1, 1]} : vector<128x4xf32> to vector<128x1xf32>
    %17 = vector.extract_strided_slice %1 {offsets = [2, 0], sizes = [1, 32], strides = [1, 1]} : vector<4x32xf32> to vector<1x32xf32>
    %18 = vector.broadcast %16 : vector<128x1xf32> to vector<128x32xf32>
    %19 = vector.broadcast %17 : vector<1x32xf32> to vector<128x32xf32>
    %20 = arith.mulf %18, %19 : vector<128x32xf32>
    %21 = arith.addf %15, %20 : vector<128x32xf32>
    %22 = vector.extract_strided_slice %0 {offsets = [0, 3], sizes = [128, 1], strides = [1, 1]} : vector<128x4xf32> to vector<128x1xf32>
    %23 = vector.extract_strided_slice %1 {offsets = [3, 0], sizes = [1, 32], strides = [1, 1]} : vector<4x32xf32> to vector<1x32xf32>
    %24 = vector.broadcast %22 : vector<128x1xf32> to vector<128x32xf32>
    %25 = vector.broadcast %23 : vector<1x32xf32> to vector<128x32xf32>
    %26 = arith.mulf %24, %25 : vector<128x32xf32>
    %27 = arith.addf %21, %26 : vector<128x32xf32>
    %28 = vector.broadcast %2 : vector<1x32xf32> to vector<128x32xf32>
    %29 = arith.addf %27, %28 : vector<128x32xf32>
    %cst = arith.constant 0.000000e+00 : f32
    %30 = vector.broadcast %cst : f32 to vector<128x32xf32>
    %31 = arith.maximumf %29, %30 : vector<128x32xf32>
    %32 = vector.broadcast %3 : vector<1x32xf32> to vector<128x32xf32>
    %33 = arith.mulf %31, %32 : vector<128x32xf32>
    %cst_9 = arith.constant dense<0.000000e+00> : vector<128xf32>
    %34 = vector.multi_reduction <add>, %33, %cst_9 [1] : vector<128x32xf32> to vector<128xf32>
    %35 = vector.shape_cast %34 : vector<128xf32> to vector<128x1xf32>
    %36 = vector.broadcast %4 : vector<1x1xf32> to vector<128x1xf32>
    %37 = arith.addf %35, %36 : vector<128x1xf32>
    %c0_10 = arith.constant 0 : index
    %c0_11 = arith.constant 0 : index
    %38 = vector.load %arg6[%c0_10, %c0_11] : memref<128x1xf32, #tpu.memory_space<vmem>>, vector<128x1xf32>
    tpu.vector_store %arg6[%c0_10, %c0_11], %37 {strides = array<i32>} : memref<128x1xf32, #tpu.memory_space<vmem>>, vector<128x1xf32>,
    return
  }
  func.func @transform_0(%arg0: i32) -> (i32, i32) {
    %c0_i32 = arith.constant 0 : i32
    %c0_i32_0 = arith.constant 0 : i32
    return %arg0, %c0_i32 : i32, i32
  }
  func.func @transform_1(%arg0: i32) -> (i32, i32) {
    %c0_i32 = arith.constant 0 : i32
    %c0_i32_0 = arith.constant 0 : i32
    %c0_i32_1 = arith.constant 0 : i32
    return %c0_i32, %c0_i32_0 : i32, i32
  }
  func.func @transform_2(%arg0: i32) -> (i32, i32) {
    %c0_i32 = arith.constant 0 : i32
    %c0_i32_0 = arith.constant 0 : i32
    %c0_i32_1 = arith.constant 0 : i32
    return %c0_i32, %c0_i32_0 : i32, i32
  }
  func.func @transform_3(%arg0: i32) -> (i32, i32) {
    %c0_i32 = arith.constant 0 : i32
    %c0_i32_0 = arith.constant 0 : i32
    %c0_i32_1 = arith.constant 0 : i32
    return %c0_i32, %c0_i32_0 : i32, i32
  }
  func.func @transform_4(%arg0: i32) -> (i32, i32) {
    %c0_i32 = arith.constant 0 : i32
    %c0_i32_0 = arith.constant 0 : i32
    %c0_i32_1 = arith.constant 0 : i32
    return %c0_i32, %c0_i32_0 : i32, i32
  }
  func.func @transform_5(%arg0: i32) -> (i32, i32) {
    %c0_i32 = arith.constant 0 : i32
    %c0_i32_0 = arith.constant 0 : i32
    return %arg0, %c0_i32 : i32, i32
  }
}

</mosaic_0001>

<llo_original>
// kernel: ffnn_forward.1
$region0: #{ffnn_forward.1}
  #allocation0 [shape = 'u32[]', space=smem, size = 0x4, offset = 0x4, fixed_abs, tag = 'smem constant byte address 0x4 - core index']
  #allocation1 [shape = 'u32[144,128]{1,0:T(1,128)}', space=vmem, size = 0x12000, scoped, tag = 'internal scratch']
  #allocation2 [shape = 'f32[1,1]{1,0:T(1,128)S(1)}', space=vmem, size = 0x200, scoped, tag = 'scoped memory for ffnn_forward.1']
  %s0 = inlined_call_operand.vmem [shape: f32[256,4], index: 0, kind: input, shape index: {}]
  %s1 = inlined_call_operand.vmem [shape: f32[4,32], index: 1, kind: input, shape index: {}]
  %s2 = inlined_call_operand.vmem [shape: f32[1,32], index: 2, kind: input, shape index: {}]
  %s3 = inlined_call_operand.vmem [shape: f32[1,32], index: 3, kind: input, shape index: {}]
  %s4 = inlined_call_operand.<no memory space> [shape: f32[1,1], index: 4, kind: input, shape index: {}]
  %s5 = inlined_call_operand.vmem [shape: f32[256,1], index: 5, kind: output, shape index: {}]
  %s6 = sld [smem:[#allocation0]]
  $region53: #{ffnn_forward.1} parent=0
    _
  %s8 = ssub.s32 1, %s6
  %s9 = scalar_select 0, %s8, %s6
  %v10 = vstv %s4
  %11 = vst [vmem:[#allocation2] sm:$0x1] %v10
  loop: start=0, step=1, limit=4
  $region2: #{ffnn_forward.1} parent=0 // loop_pre_header
    _
  $region3: #{ffnn_forward.1} parent=0 // loop_header
    %s13 = sphi 0, %s17
    %p14 = scmp.ge.s32.totalorder %s13, 4
    %s23 = sphi 0, %s25
    %s26 = sphi 0, %s23
    %s27 = sphi 0, %s26
    %s43 = sphi 0, %s27
    %s47 = sphi 0, %s47
    %s49 = sphi 0, %s47
    %s50 = sphi 0, %s49
    %s64 = sphi 0, %s50
    %s68 = sphi 0, %s68
    %s70 = sphi 0, %s68
    %s71 = sphi 0, %s70
    %s85 = sphi 0, %s71
    %s89 = sphi 0, %s89
    %s91 = sphi 0, %s89
    %s92 = sphi 0, %s91
    %s106 = sphi 0, %s92
    %s110 = sphi 0, %s110
    %s112 = sphi 0, %s110
    %s113 = sphi 0, %s112
    %s127 = sphi 0, %s113
    %s133 = sphi 0, %s135
    %s136 = sphi 0, %s133
    %s137 = sphi 0, %s136
    %s153 = sphi 0, %s137
  $region4: #{ffnn_forward.1} parent=0 // loop_header_branch
    %16 = sbr.rel (%p14) target = $region8
  $region5: #{ffnn_forward.1} parent=0 // loop_body
    %s18 = ssub.s32 %s13, 1
    %s19 = ssub.s32 %s13, 2
    %s20 = sadd.s32 %s13, 1
    %s21 = ssub.s32 %s13, %s20
    %p22 = scmp.eq.s32.totalorder %s21, 0
    %s24 = sadd.s32 %s23, 1
    %s25 = scalar_select %p22, %s23, %s24
    %p28 = pneg %p22
    %p29 = scmp.eq.s32.totalorder %s13, 1
    %p30 = por %p28, %p29
    %p31 = scmp.ne.s32.totalorder %s23, %s26
    %p32 = scmp.eq.s32.totalorder %s13, 0
    %p33 = por %p31, %p32
    %p34 = scmp.ne.s32.totalorder %s23, %s26
    %p35 = scmp.eq.s32.totalorder %s18, 1
    %p36 = por %p34, %p35
    %p37 = scmp.ne.s32.totalorder %s26, %s27
    %p38 = scmp.eq.s32.totalorder %s18, 0
    %p39 = por %p37, %p38
    %p40 = scmp.ne.s32.totalorder %s26, %s27
    %p41 = scmp.eq.s32.totalorder %s19, 1
    %p42 = por %p40, %p41
    %p44 = scmp.ne.s32.totalorder %s27, %s43
    %p45 = scmp.eq.s32.totalorder %s19, 0
    %p46 = por %p44, %p45
    %s48 = sadd.s32 %s47, 1
    %p51 = scmp.eq.s32.totalorder %s13, 1
    %p52 = scmp.ne.s32.totalorder %s47, %s49
    %p53 = scmp.eq.s32.totalorder %s13, 0
    %p54 = por %p52, %p53
    %p55 = scmp.ne.s32.totalorder %s47, %s49
    %p56 = scmp.eq.s32.totalorder %s18, 1
    %p57 = por %p55, %p56
    %p58 = scmp.ne.s32.totalorder %s49, %s50
    %p59 = scmp.eq.s32.totalorder %s18, 0
    %p60 = por %p58, %p59
    %p61 = scmp.ne.s32.totalorder %s49, %s50
    %p62 = scmp.eq.s32.totalorder %s19, 1
    %p63 = por %p61, %p62
    %p65 = scmp.ne.s32.totalorder %s50, %s64
    %p66 = scmp.eq.s32.totalorder %s19, 0
    %p67 = por %p65, %p66
    %s69 = sadd.s32 %s68, 1
    %p72 = scmp.eq.s32.totalorder %s13, 1
    %p73 = scmp.ne.s32.totalorder %s68, %s70
    %p74 = scmp.eq.s32.totalorder %s13, 0
    %p75 = por %p73, %p74
    %p76 = scmp.ne.s32.totalorder %s68, %s70
    %p77 = scmp.eq.s32.totalorder %s18, 1
    %p78 = por %p76, %p77
    %p79 = scmp.ne.s32.totalorder %s70, %s71
    %p80 = scmp.eq.s32.totalorder %s18, 0
    %p81 = por %p79, %p80
    %p82 = scmp.ne.s32.totalorder %s70, %s71
    %p83 = scmp.eq.s32.totalorder %s19, 1
    %p84 = por %p82, %p83
    %p86 = scmp.ne.s32.totalorder %s71, %s85
    %p87 = scmp.eq.s32.totalorder %s19, 0
    %p88 = por %p86, %p87
    %s90 = sadd.s32 %s89, 1
    %p93 = scmp.eq.s32.totalorder %s13, 1
    %p94 = scmp.ne.s32.totalorder %s89, %s91
    %p95 = scmp.eq.s32.totalorder %s13, 0
    %p96 = por %p94, %p95
    %p97 = scmp.ne.s32.totalorder %s89, %s91
    %p98 = scmp.eq.s32.totalorder %s18, 1
    %p99 = por %p97, %p98
    %p100 = scmp.ne.s32.totalorder %s91, %s92
    %p101 = scmp.eq.s32.totalorder %s18, 0
    %p102 = por %p100, %p101
    %p103 = scmp.ne.s32.totalorder %s91, %s92
    %p104 = scmp.eq.s32.totalorder %s19, 1
    %p105 = por %p103, %p104
    %p107 = scmp.ne.s32.totalorder %s92, %s106
    %p108 = scmp.eq.s32.totalorder %s19, 0
    %p109 = por %p107, %p108
    %s111 = sadd.s32 %s110, 1
    %p114 = scmp.eq.s32.totalorder %s13, 1
    %p115 = scmp.ne.s32.totalorder %s110, %s112
    %p116 = scmp.eq.s32.totalorder %s13, 0
    %p117 = por %p115, %p116
    %p118 = scmp.ne.s32.totalorder %s110, %s112
    %p119 = scmp.eq.s32.totalorder %s18, 1
    %p120 = por %p118, %p119
    %p121 = scmp.ne.s32.totalorder %s112, %s113
    %p122 = scmp.eq.s32.totalorder %s18, 0
    %p123 = por %p121, %p122
    %p124 = scmp.ne.s32.totalorder %s112, %s113
    %p125 = scmp.eq.s32.totalorder %s19, 1
    %p126 = por %p124, %p125
    %p128 = scmp.ne.s32.totalorder %s113, %s127
    %p129 = scmp.eq.s32.totalorder %s19, 0
    %p130 = por %p128, %p129
    %s131 = ssub.s32 %s13, %s20
    %p132 = scmp.eq.s32.totalorder %s131, 0
    %s134 = sadd.s32 %s133, 1
    %s135 = scalar_select %p132, %s133, %s134
    %p138 = pneg %p132
    %p139 = scmp.eq.s32.totalorder %s13, 1
    %p140 = por %p138, %p139
    %p141 = scmp.ne.s32.totalorder %s133, %s136
    %p142 = scmp.eq.s32.totalorder %s13, 0
    %p143 = por %p141, %p142
    %p144 = scmp.ne.s32.totalorder %s133, %s136
    %p145 = scmp.eq.s32.totalorder %s18, 1
    %p146 = por %p144, %p145
    %p147 = scmp.ne.s32.totalorder %s136, %s137
    %p148 = scmp.eq.s32.totalorder %s18, 0
    %p149 = por %p147, %p148
    %p150 = scmp.ne.s32.totalorder %s136, %s137
    %p151 = scmp.eq.s32.totalorder %s19, 1
    %p152 = por %p150, %p151
    %p154 = scmp.ne.s32.totalorder %s137, %s153
    %p155 = scmp.eq.s32.totalorder %s19, 0
    %p156 = por %p154, %p155
    %p157 = scmp.le.s32.totalorder 1, %s13
    %p158 = scmp.lt.s32.totalorder %s13, 3
    %p159 = pnand %p157, %p158
    %p160 = pneg %p159
    // Predicated region
    $region9: #{ffnn_forward.1} parent=5 // pred_check
      _
    $region10: #{ffnn_forward.1} parent=5 // pred_check_branch
      %162 = sbr.rel (%p159) target = $region12
    $region11: #{ffnn_forward.1} parent=5 // pred_region
      %s163 = ssub.s32 %s13, 1
      // Predicated region
      $region13: #{ffnn_forward.1} parent=11 // pred_check
        %p164 = pneg %p60
      $region14: #{ffnn_forward.1} parent=11 // pred_check_branch
        %166 = sbr.rel (%p164) target = $region16
      $region15: #{ffnn_forward.1} parent=11 // pred_region
        _
      $region16: #{ffnn_forward.1} parent=11 // pred_fallthru
        _
      // Predicated region
      $region17: #{ffnn_forward.1} parent=11 // pred_check
        %p167 = pneg %p81
      $region18: #{ffnn_forward.1} parent=11 // pred_check_branch
        %169 = sbr.rel (%p167) target = $region20
      $region19: #{ffnn_forward.1} parent=11 // pred_region
        _
      $region20: #{ffnn_forward.1} parent=11 // pred_fallthru
        _
      // Predicated region
      $region21: #{ffnn_forward.1} parent=11 // pred_check
        %p170 = pneg %p102
      $region22: #{ffnn_forward.1} parent=11 // pred_check_branch
        %172 = sbr.rel (%p170) target = $region24
      $region23: #{ffnn_forward.1} parent=11 // pred_region
        _
      $region24: #{ffnn_forward.1} parent=11 // pred_fallthru
        _
      // Predicated region
      $region25: #{ffnn_forward.1} parent=11 // pred_check
        %p173 = pneg %p123
      $region26: #{ffnn_forward.1} parent=11 // pred_check_branch
        %175 = sbr.rel (%p173) target = $region28
      $region27: #{ffnn_forward.1} parent=11 // pred_region
        _
      $region28: #{ffnn_forward.1} parent=11 // pred_fallthru
        _
    $region12: #{ffnn_forward.1} parent=5 // pred_fallthru
      _
    %p176 = scmp.lt.s32.totalorder %s13, 2
    // Predicated region
    $region29: #{ffnn_forward.1} parent=5 // pred_check
      %p177 = pneg %p176
    $region30: #{ffnn_forward.1} parent=5 // pred_check_branch
      %179 = sbr.rel (%p177) target = $region32
    $region31: #{ffnn_forward.1} parent=5 // pred_region
      // Predicated region
      $region33: #{ffnn_forward.1} parent=31 // pred_check
        %p180 = pneg %p33
      $region34: #{ffnn_forward.1} parent=31 // pred_check_branch
        %182 = sbr.rel (%p180) target = $region36
      $region35: #{ffnn_forward.1} parent=31 // pred_region
        %s183 = smul.u32 16, %s13
        %p184 = scmp.lt.s32.totalorder %s183, 31
        %s185 = scalar_select %p184, %s183, 31
        %s186 = smul.addr %s185, 8
        %s187 = scalar_lea.vmem %s0, %s186
        %s188 = smul.u32 16, %s13
      $region36: #{ffnn_forward.1} parent=31 // pred_fallthru
        _
    $region32: #{ffnn_forward.1} parent=5 // pred_fallthru
      _
    %p189 = scmp.le.s32.totalorder 1, %s13
    %p190 = scmp.lt.s32.totalorder %s13, 3
    %p191 = pnand %p189, %p190
    %p192 = pneg %p191
    // Predicated region
    $region37: #{ffnn_forward.1} parent=5 // pred_check
      _
    $region38: #{ffnn_forward.1} parent=5 // pred_check_branch
      %194 = sbr.rel (%p191) target = $region40
    $region39: #{ffnn_forward.1} parent=5 // pred_region
      %s195 = ssub.s32 %s13, 1
      %s196 = smul.u32 16, %s18
      %p197 = scmp.lt.s32.totalorder %s196, 31
      %s198 = scalar_select %p197, %s196, 31
      %s199 = smul.addr %s198, 8
      %s200 = scalar_lea.vmem %s0, %s199
      %p201 = pneg %p39
      %p202 = pneg %p36
      %p203 = pneg %p60
      %p204 = pneg %p57
      %p205 = pneg %p81
      %p206 = pneg %p78
      %p207 = pneg %p102
      %p208 = pneg %p99
      %p209 = pneg %p123
      %p210 = pneg %p120
      %p211 = pneg %p149
      %p212 = pneg %p146
      %s213 = smul.u32 16, %s18
      %p214 = scmp.lt.s32.totalorder %s213, 31
      %s215 = scalar_select %p214, %s213, 31
      %s216 = smul.addr %s215, 8
      %s217 = scalar_lea.vmem %s5, %s216
      %s218 = smul.u32 16, %s18
      %p219 = scmp.lt.s32.totalorder %s218, 31
      %s220 = scalar_select %p219, %s218, 31
      %s221 = smul.addr %s220, 8
      %s222 = scalar_lea.vmem %s0, %s221
      %s223 = smul.u32 16, %s18
      %s224 = smul.u32 16, %s18
      %p225 = scmp.lt.s32.totalorder %s224, 31
      %s226 = scalar_select %p225, %s224, 31
      %s227 = smul.addr %s226, 8
      %s228 = scalar_lea.vmem %s5, %s227
      %s229 = smul.u32 16, %s18
      %v230 = vld [vmem:[%s222] sm:$0xff]
      %v231 = vld [vmem:[%s222 + $0x8] sm:$0xff]
      %v232 = vld [vmem:[%s222 + $0x10] sm:$0xff]
      %v233 = vld [vmem:[%s222 + $0x18] sm:$0xff]
      %v234 = vld [vmem:[%s222 + $0x20] sm:$0xff]
      %v235 = vld [vmem:[%s222 + $0x28] sm:$0xff]
      %v236 = vld [vmem:[%s222 + $0x30] sm:$0xff]
      %v237 = vld [vmem:[%s222 + $0x38] sm:$0xff]
      %v238 = vld [vmem:[%s222 + $0x40] sm:$0xff]
      %v239 = vld [vmem:[%s222 + $0x48] sm:$0xff]
      %v240 = vld [vmem:[%s222 + $0x50] sm:$0xff]
      %v241 = vld [vmem:[%s222 + $0x58] sm:$0xff]
      %v242 = vld [vmem:[%s222 + $0x60] sm:$0xff]
      %v243 = vld [vmem:[%s222 + $0x68] sm:$0xff]
      %v244 = vld [vmem:[%s222 + $0x70] sm:$0xff]
      %v245 = vld [vmem:[%s222 + $0x78] sm:$0xff]
      %v246 = vld [vmem:[%s1] sm:$0xf]
      %v247 = vld [vmem:[%s2] sm:$0x1]
      %v248 = vld [vmem:[%s3] sm:$0x1]
      %v249 = vld [vmem:[#allocation2] sm:$0x1]
      %251 = vset.pattern.permute.xlu0 0
      %252 = vperm.xlu0 %251, %v230
      %v253 = vpop.permute.xlu0 %252
      %256 = vset.pattern.permute.xlu0 0
      %257 = vperm.xlu0 %256, %v231
      %v258 = vpop.permute.xlu0 %257
      %261 = vset.pattern.permute.xlu0 0
      %262 = vperm.xlu0 %261, %v232
      %v263 = vpop.permute.xlu0 %262
      %266 = vset.pattern.permute.xlu0 0
      %267 = vperm.xlu0 %266, %v233
      %v268 = vpop.permute.xlu0 %267
      %271 = vset.pattern.permute.xlu0 0
      %272 = vperm.xlu0 %271, %v234
      %v273 = vpop.permute.xlu0 %272
      %276 = vset.pattern.permute.xlu0 0
      %277 = vperm.xlu0 %276, %v235
      %v278 = vpop.permute.xlu0 %277
      %281 = vset.pattern.permute.xlu0 0
      %282 = vperm.xlu0 %281, %v236
      %v283 = vpop.permute.xlu0 %282
      %286 = vset.pattern.permute.xlu0 0
      %287 = vperm.xlu0 %286, %v237
      %v288 = vpop.permute.xlu0 %287
      %291 = vset.pattern.permute.xlu0 0
      %292 = vperm.xlu0 %291, %v238
      %v293 = vpop.permute.xlu0 %292
      %296 = vset.pattern.permute.xlu0 0
      %297 = vperm.xlu0 %296, %v239
      %v298 = vpop.permute.xlu0 %297
      %301 = vset.pattern.permute.xlu0 0
      %302 = vperm.xlu0 %301, %v240
      %v303 = vpop.permute.xlu0 %302
      %306 = vset.pattern.permute.xlu0 0
      %307 = vperm.xlu0 %306, %v241
      %v308 = vpop.permute.xlu0 %307
      %311 = vset.pattern.permute.xlu0 0
      %312 = vperm.xlu0 %311, %v242
      %v313 = vpop.permute.xlu0 %312
      %316 = vset.pattern.permute.xlu0 0
      %317 = vperm.xlu0 %316, %v243
      %v318 = vpop.permute.xlu0 %317
      %321 = vset.pattern.permute.xlu0 0
      %322 = vperm.xlu0 %321, %v244
      %v323 = vpop.permute.xlu0 %322
      %326 = vset.pattern.permute.xlu0 0
      %327 = vperm.xlu0 %326, %v245
      %v328 = vpop.permute.xlu0 %327
      %v330 = vlaneseq
      %v331 = vshrl.u32 %v330, 7
      %v332 = vsub.s32 0, %v331
      %v333 = vrot.slane %v246, %v332
      %v334 = vmul.f32 %v253, %v333
      %v335 = vmul.f32 %v258, %v333
      %v336 = vmul.f32 %v263, %v333
      %v337 = vmul.f32 %v268, %v333
      %v338 = vmul.f32 %v273, %v333
      %v339 = vmul.f32 %v278, %v333
      %v340 = vmul.f32 %v283, %v333
      %v341 = vmul.f32 %v288, %v333
      %v342 = vmul.f32 %v293, %v333
      %v343 = vmul.f32 %v298, %v333
      %v344 = vmul.f32 %v303, %v333
      %v345 = vmul.f32 %v308, %v333
      %v346 = vmul.f32 %v313, %v333
      %v347 = vmul.f32 %v318, %v333
      %v348 = vmul.f32 %v323, %v333
      %v349 = vmul.f32 %v328, %v333
      %350 = vset.pattern.permute.xlu0 1
      %351 = vperm.xlu0 %350, %v230
      %v352 = vpop.permute.xlu0 %351
      %354 = vset.pattern.permute.xlu0 1
      %355 = vperm.xlu0 %354, %v231
      %v356 = vpop.permute.xlu0 %355
      %358 = vset.pattern.permute.xlu0 1
      %359 = vperm.xlu0 %358, %v232
      %v360 = vpop.permute.xlu0 %359
      %362 = vset.pattern.permute.xlu0 1
      %363 = vperm.xlu0 %362, %v233
      %v364 = vpop.permute.xlu0 %363
      %366 = vset.pattern.permute.xlu0 1
      %367 = vperm.xlu0 %366, %v234
      %v368 = vpop.permute.xlu0 %367
      %370 = vset.pattern.permute.xlu0 1
      %371 = vperm.xlu0 %370, %v235
      %v372 = vpop.permute.xlu0 %371
      %374 = vset.pattern.permute.xlu0 1
      %375 = vperm.xlu0 %374, %v236
      %v376 = vpop.permute.xlu0 %375
      %378 = vset.pattern.permute.xlu0 1
      %379 = vperm.xlu0 %378, %v237
      %v380 = vpop.permute.xlu0 %379
      %382 = vset.pattern.permute.xlu0 1
      %383 = vperm.xlu0 %382, %v238
      %v384 = vpop.permute.xlu0 %383
      %386 = vset.pattern.permute.xlu0 1
      %387 = vperm.xlu0 %386, %v239
      %v388 = vpop.permute.xlu0 %387
      %390 = vset.pattern.permute.xlu0 1
      %391 = vperm.xlu0 %390, %v240
      %v392 = vpop.permute.xlu0 %391
      %394 = vset.pattern.permute.xlu0 1
      %395 = vperm.xlu0 %394, %v241
      %v396 = vpop.permute.xlu0 %395
      %398 = vset.pattern.permute.xlu0 1
      %399 = vperm.xlu0 %398, %v242
      %v400 = vpop.permute.xlu0 %399
      %402 = vset.pattern.permute.xlu0 1
      %403 = vperm.xlu0 %402, %v243
      %v404 = vpop.permute.xlu0 %403
      %406 = vset.pattern.permute.xlu0 1
      %407 = vperm.xlu0 %406, %v244
      %v408 = vpop.permute.xlu0 %407
      %410 = vset.pattern.permute.xlu0 1
      %411 = vperm.xlu0 %410, %v245
      %v412 = vpop.permute.xlu0 %411
      %v414 = vlaneseq
      %v415 = vshrl.u32 %v414, 7
      %v416 = vsub.s32 1, %v415
      %v417 = vrot.slane %v246, %v416
      %v418 = vmul.f32 %v352, %v417
      %v419 = vmul.f32 %v356, %v417
      %v420 = vmul.f32 %v360, %v417
      %v421 = vmul.f32 %v364, %v417
      %v422 = vmul.f32 %v368, %v417
      %v423 = vmul.f32 %v372, %v417
      %v424 = vmul.f32 %v376, %v417
      %v425 = vmul.f32 %v380, %v417
      %v426 = vmul.f32 %v384, %v417
      %v427 = vmul.f32 %v388, %v417
      %v428 = vmul.f32 %v392, %v417
      %v429 = vmul.f32 %v396, %v417
      %v430 = vmul.f32 %v400, %v417
      %v431 = vmul.f32 %v404, %v417
      %v432 = vmul.f32 %v408, %v417
      %v433 = vmul.f32 %v412, %v417
      %v434 = vadd.f32 %v334, %v418
      %v435 = vadd.f32 %v335, %v419
      %v436 = vadd.f32 %v336, %v420
      %v437 = vadd.f32 %v337, %v421
      %v438 = vadd.f32 %v338, %v422
      %v439 = vadd.f32 %v339, %v423
      %v440 = vadd.f32 %v340, %v424
      %v441 = vadd.f32 %v341, %v425
      %v442 = vadd.f32 %v342, %v426
      %v443 = vadd.f32 %v343, %v427
      %v444 = vadd.f32 %v344, %v428
      %v445 = vadd.f32 %v345, %v429
      %v446 = vadd.f32 %v346, %v430
      %v447 = vadd.f32 %v347, %v431
      %v448 = vadd.f32 %v348, %v432
      %v449 = vadd.f32 %v349, %v433
      %450 = vset.pattern.permute.xlu0 2
      %451 = vperm.xlu0 %450, %v230
      %v452 = vpop.permute.xlu0 %451
      %454 = vset.pattern.permute.xlu0 2
      %455 = vperm.xlu0 %454, %v231
      %v456 = vpop.permute.xlu0 %455
      %458 = vset.pattern.permute.xlu0 2
      %459 = vperm.xlu0 %458, %v232
      %v460 = vpop.permute.xlu0 %459
      %462 = vset.pattern.permute.xlu0 2
      %463 = vperm.xlu0 %462, %v233
      %v464 = vpop.permute.xlu0 %463
      %466 = vset.pattern.permute.xlu0 2
      %467 = vperm.xlu0 %466, %v234
      %v468 = vpop.permute.xlu0 %467
      %470 = vset.pattern.permute.xlu0 2
      %471 = vperm.xlu0 %470, %v235
      %v472 = vpop.permute.xlu0 %471
      %474 = vset.pattern.permute.xlu0 2
      %475 = vperm.xlu0 %474, %v236
      %v476 = vpop.permute.xlu0 %475
      %478 = vset.pattern.permute.xlu0 2
      %479 = vperm.xlu0 %478, %v237
      %v480 = vpop.permute.xlu0 %479
      %482 = vset.pattern.permute.xlu0 2
      %483 = vperm.xlu0 %482, %v238
      %v484 = vpop.permute.xlu0 %483
      %486 = vset.pattern.permute.xlu0 2
      %487 = vperm.xlu0 %486, %v239
      %v488 = vpop.permute.xlu0 %487
      %490 = vset.pattern.permute.xlu0 2
      %491 = vperm.xlu0 %490, %v240
      %v492 = vpop.permute.xlu0 %491
      %494 = vset.pattern.permute.xlu0 2
      %495 = vperm.xlu0 %494, %v241
      %v496 = vpop.permute.xlu0 %495
      %498 = vset.pattern.permute.xlu0 2
      %499 = vperm.xlu0 %498, %v242
      %v500 = vpop.permute.xlu0 %499
      %502 = vset.pattern.permute.xlu0 2
      %503 = vperm.xlu0 %502, %v243
      %v504 = vpop.permute.xlu0 %503
      %506 = vset.pattern.permute.xlu0 2
      %507 = vperm.xlu0 %506, %v244
      %v508 = vpop.permute.xlu0 %507
      %510 = vset.pattern.permute.xlu0 2
      %511 = vperm.xlu0 %510, %v245
      %v512 = vpop.permute.xlu0 %511
      %v514 = vlaneseq
      %v515 = vshrl.u32 %v514, 7
      %v516 = vsub.s32 2, %v515
      %v517 = vrot.slane %v246, %v516
      %v518 = vmul.f32 %v452, %v517
      %v519 = vmul.f32 %v456, %v517
      %v520 = vmul.f32 %v460, %v517
      %v521 = vmul.f32 %v464, %v517
      %v522 = vmul.f32 %v468, %v517
      %v523 = vmul.f32 %v472, %v517
      %v524 = vmul.f32 %v476, %v517
      %v525 = vmul.f32 %v480, %v517
      %v526 = vmul.f32 %v484, %v517
      %v527 = vmul.f32 %v488, %v517
      %v528 = vmul.f32 %v492, %v517
      %v529 = vmul.f32 %v496, %v517
      %v530 = vmul.f32 %v500, %v517
      %v531 = vmul.f32 %v504, %v517
      %v532 = vmul.f32 %v508, %v517
      %v533 = vmul.f32 %v512, %v517
      %v534 = vadd.f32 %v434, %v518
      %v535 = vadd.f32 %v435, %v519
      %v536 = vadd.f32 %v436, %v520
      %v537 = vadd.f32 %v437, %v521
      %v538 = vadd.f32 %v438, %v522
      %v539 = vadd.f32 %v439, %v523
      %v540 = vadd.f32 %v440, %v524
      %v541 = vadd.f32 %v441, %v525
      %v542 = vadd.f32 %v442, %v526
      %v543 = vadd.f32 %v443, %v527
      %v544 = vadd.f32 %v444, %v528
      %v545 = vadd.f32 %v445, %v529
      %v546 = vadd.f32 %v446, %v530
      %v547 = vadd.f32 %v447, %v531
      %v548 = vadd.f32 %v448, %v532
      %v549 = vadd.f32 %v449, %v533
      %550 = vset.pattern.permute.xlu0 3
      %551 = vperm.xlu0 %550, %v230
      %v552 = vpop.permute.xlu0 %551
      %554 = vset.pattern.permute.xlu0 3
      %555 = vperm.xlu0 %554, %v231
      %v556 = vpop.permute.xlu0 %555
      %558 = vset.pattern.permute.xlu0 3
      %559 = vperm.xlu0 %558, %v232
      %v560 = vpop.permute.xlu0 %559
      %562 = vset.pattern.permute.xlu0 3
      %563 = vperm.xlu0 %562, %v233
      %v564 = vpop.permute.xlu0 %563
      %566 = vset.pattern.permute.xlu0 3
      %567 = vperm.xlu0 %566, %v234
      %v568 = vpop.permute.xlu0 %567
      %570 = vset.pattern.permute.xlu0 3
      %571 = vperm.xlu0 %570, %v235
      %v572 = vpop.permute.xlu0 %571
      %574 = vset.pattern.permute.xlu0 3
      %575 = vperm.xlu0 %574, %v236
      %v576 = vpop.permute.xlu0 %575
      %578 = vset.pattern.permute.xlu0 3
      %579 = vperm.xlu0 %578, %v237
      %v580 = vpop.permute.xlu0 %579
      %582 = vset.pattern.permute.xlu0 3
      %583 = vperm.xlu0 %582, %v238
      %v584 = vpop.permute.xlu0 %583
      %586 = vset.pattern.permute.xlu0 3
      %587 = vperm.xlu0 %586, %v239
      %v588 = vpop.permute.xlu0 %587
      %590 = vset.pattern.permute.xlu0 3
      %591 = vperm.xlu0 %590, %v240
      %v592 = vpop.permute.xlu0 %591
      %594 = vset.pattern.permute.xlu0 3
      %595 = vperm.xlu0 %594, %v241
      %v596 = vpop.permute.xlu0 %595
      %598 = vset.pattern.permute.xlu0 3
      %599 = vperm.xlu0 %598, %v242
      %v600 = vpop.permute.xlu0 %599
      %602 = vset.pattern.permute.xlu0 3
      %603 = vperm.xlu0 %602, %v243
      %v604 = vpop.permute.xlu0 %603
      %606 = vset.pattern.permute.xlu0 3
      %607 = vperm.xlu0 %606, %v244
      %v608 = vpop.permute.xlu0 %607
      %610 = vset.pattern.permute.xlu0 3
      %611 = vperm.xlu0 %610, %v245
      %v612 = vpop.permute.xlu0 %611
      %v614 = vlaneseq
      %v615 = vshrl.u32 %v614, 7
      %v616 = vsub.s32 3, %v615
      %v617 = vrot.slane %v246, %v616
      %v618 = vmul.f32 %v552, %v617
      %v619 = vmul.f32 %v556, %v617
      %v620 = vmul.f32 %v560, %v617
      %v621 = vmul.f32 %v564, %v617
      %v622 = vmul.f32 %v568, %v617
      %v623 = vmul.f32 %v572, %v617
      %v624 = vmul.f32 %v576, %v617
      %v625 = vmul.f32 %v580, %v617
      %v626 = vmul.f32 %v584, %v617
      %v627 = vmul.f32 %v588, %v617
      %v628 = vmul.f32 %v592, %v617
      %v629 = vmul.f32 %v596, %v617
      %v630 = vmul.f32 %v600, %v617
      %v631 = vmul.f32 %v604, %v617
      %v632 = vmul.f32 %v608, %v617
      %v633 = vmul.f32 %v612, %v617
      %v634 = vadd.f32 %v534, %v618
      %v635 = vadd.f32 %v535, %v619
      %v636 = vadd.f32 %v536, %v620
      %v637 = vadd.f32 %v537, %v621
      %v638 = vadd.f32 %v538, %v622
      %v639 = vadd.f32 %v539, %v623
      %v640 = vadd.f32 %v540, %v624
      %v641 = vadd.f32 %v541, %v625
      %v642 = vadd.f32 %v542, %v626
      %v643 = vadd.f32 %v543, %v627
      %v644 = vadd.f32 %v544, %v628
      %v645 = vadd.f32 %v545, %v629
      %v646 = vadd.f32 %v546, %v630
      %v647 = vadd.f32 %v547, %v631
      %v648 = vadd.f32 %v548, %v632
      %v649 = vadd.f32 %v549, %v633
      %v651 = vlaneseq
      %v652 = vshrl.u32 %v651, 7
      %v653 = vsub.s32 0, %v652
      %v654 = vrot.slane %v247, %v653
      %v656 = vadd.f32 %v634, %v654
      %v657 = vadd.f32 %v635, %v654
      %v658 = vadd.f32 %v636, %v654
      %v659 = vadd.f32 %v637, %v654
      %v660 = vadd.f32 %v638, %v654
      %v661 = vadd.f32 %v639, %v654
      %v662 = vadd.f32 %v640, %v654
      %v663 = vadd.f32 %v641, %v654
      %v664 = vadd.f32 %v642, %v654
      %v665 = vadd.f32 %v643, %v654
      %v666 = vadd.f32 %v644, %v654
      %v667 = vadd.f32 %v645, %v654
      %v668 = vadd.f32 %v646, %v654
      %v669 = vadd.f32 %v647, %v654
      %v670 = vadd.f32 %v648, %v654
      %v671 = vadd.f32 %v649, %v654
      %v672 = vmax.f32 %v656, 0.0
      %v673 = vmax.f32 %v657, 0.0
      %v674 = vmax.f32 %v658, 0.0
      %v675 = vmax.f32 %v659, 0.0
      %v676 = vmax.f32 %v660, 0.0
      %v677 = vmax.f32 %v661, 0.0
      %v678 = vmax.f32 %v662, 0.0
      %v679 = vmax.f32 %v663, 0.0
      %v680 = vmax.f32 %v664, 0.0
      %v681 = vmax.f32 %v665, 0.0
      %v682 = vmax.f32 %v666, 0.0
      %v683 = vmax.f32 %v667, 0.0
      %v684 = vmax.f32 %v668, 0.0
      %v685 = vmax.f32 %v669, 0.0
      %v686 = vmax.f32 %v670, 0.0
      %v687 = vmax.f32 %v671, 0.0
      %v689 = vlaneseq
      %v690 = vshrl.u32 %v689, 7
      %v691 = vsub.s32 0, %v690
      %v692 = vrot.slane %v248, %v691
      %v694 = vmul.f32 %v672, %v692
      %v695 = vmul.f32 %v673, %v692
      %v696 = vmul.f32 %v674, %v692
      %v697 = vmul.f32 %v675, %v692
      %v698 = vmul.f32 %v676, %v692
      %v699 = vmul.f32 %v677, %v692
      %v700 = vmul.f32 %v678, %v692
      %v701 = vmul.f32 %v679, %v692
      %v702 = vmul.f32 %v680, %v692
      %v703 = vmul.f32 %v681, %v692
      %v704 = vmul.f32 %v682, %v692
      %v705 = vmul.f32 %v683, %v692
      %v706 = vmul.f32 %v684, %v692
      %v707 = vmul.f32 %v685, %v692
      %v708 = vmul.f32 %v686, %v692
      %v709 = vmul.f32 %v687, %v692
      %vm710 = vcmask 261120
      %v711 = vsel %vm710, %v694, 0.0
      %712 = vadd.xlane.f32.xlu0 %v711
      %v713 = vpop.xlane.xlu0 %712
      %v714 = vsel %vm710, %v695, 0.0
      %715 = vadd.xlane.f32.xlu0 %v714
      %v716 = vpop.xlane.xlu0 %715
      %v717 = vsel %vm710, %v696, 0.0
      %718 = vadd.xlane.f32.xlu0 %v717
      %v719 = vpop.xlane.xlu0 %718
      %v720 = vsel %vm710, %v697, 0.0
      %721 = vadd.xlane.f32.xlu0 %v720
      %v722 = vpop.xlane.xlu0 %721
      %v723 = vsel %vm710, %v698, 0.0
      %724 = vadd.xlane.f32.xlu0 %v723
      %v725 = vpop.xlane.xlu0 %724
      %v726 = vsel %vm710, %v699, 0.0
      %727 = vadd.xlane.f32.xlu0 %v726
      %v728 = vpop.xlane.xlu0 %727
      %v729 = vsel %vm710, %v700, 0.0
      %730 = vadd.xlane.f32.xlu0 %v729
      %v731 = vpop.xlane.xlu0 %730
      %v732 = vsel %vm710, %v701, 0.0
      %733 = vadd.xlane.f32.xlu0 %v732
      %v734 = vpop.xlane.xlu0 %733
      %v735 = vsel %vm710, %v702, 0.0
      %736 = vadd.xlane.f32.xlu0 %v735
      %v737 = vpop.xlane.xlu0 %736
      %v738 = vsel %vm710, %v703, 0.0
      %739 = vadd.xlane.f32.xlu0 %v738
      %v740 = vpop.xlane.xlu0 %739
      %v741 = vsel %vm710, %v704, 0.0
      %742 = vadd.xlane.f32.xlu0 %v741
      %v743 = vpop.xlane.xlu0 %742
      %v744 = vsel %vm710, %v705, 0.0
      %745 = vadd.xlane.f32.xlu0 %v744
      %v746 = vpop.xlane.xlu0 %745
      %v747 = vsel %vm710, %v706, 0.0
      %748 = vadd.xlane.f32.xlu0 %v747
      %v749 = vpop.xlane.xlu0 %748
      %v750 = vsel %vm710, %v707, 0.0
      %751 = vadd.xlane.f32.xlu0 %v750
      %v752 = vpop.xlane.xlu0 %751
      %v753 = vsel %vm710, %v708, 0.0
      %754 = vadd.xlane.f32.xlu0 %v753
      %v755 = vpop.xlane.xlu0 %754
      %v756 = vsel %vm710, %v709, 0.0
      %757 = vadd.xlane.f32.xlu0 %v756
      %v758 = vpop.xlane.xlu0 %757
      %v760 = vlaneseq
      %v761 = vshrl.u32 %v760, 7
      %v762 = vsub.s32 0, %v761
      %v763 = vrot.slane %v249, %v762
      %v765 = vadd.f32 %v713, %v763
      %v766 = vadd.f32 %v716, %v763
      %v767 = vadd.f32 %v719, %v763
      %v768 = vadd.f32 %v722, %v763
      %v769 = vadd.f32 %v725, %v763
      %v770 = vadd.f32 %v728, %v763
      %v771 = vadd.f32 %v731, %v763
      %v772 = vadd.f32 %v734, %v763
      %v773 = vadd.f32 %v737, %v763
      %v774 = vadd.f32 %v740, %v763
      %v775 = vadd.f32 %v743, %v763
      %v776 = vadd.f32 %v746, %v763
      %v777 = vadd.f32 %v749, %v763
      %v778 = vadd.f32 %v752, %v763
      %v779 = vadd.f32 %v755, %v763
      %v780 = vadd.f32 %v758, %v763
      %vm781 = vcmask 7168
      %782 = vst.msk [vmem:[%s228] sm:$0xff] %vm781, %v765
      %783 = vst.msk [vmem:[%s228 + $0x8] sm:$0xff] %vm781, %v766
      %784 = vst.msk [vmem:[%s228 + $0x10] sm:$0xff] %vm781, %v767
      %785 = vst.msk [vmem:[%s228 + $0x18] sm:$0xff] %vm781, %v768
      %786 = vst.msk [vmem:[%s228 + $0x20] sm:$0xff] %vm781, %v769
      %787 = vst.msk [vmem:[%s228 + $0x28] sm:$0xff] %vm781, %v770
      %788 = vst.msk [vmem:[%s228 + $0x30] sm:$0xff] %vm781, %v771
      %789 = vst.msk [vmem:[%s228 + $0x38] sm:$0xff] %vm781, %v772
      %790 = vst.msk [vmem:[%s228 + $0x40] sm:$0xff] %vm781, %v773
      %791 = vst.msk [vmem:[%s228 + $0x48] sm:$0xff] %vm781, %v774
      %792 = vst.msk [vmem:[%s228 + $0x50] sm:$0xff] %vm781, %v775
      %793 = vst.msk [vmem:[%s228 + $0x58] sm:$0xff] %vm781, %v776
      %794 = vst.msk [vmem:[%s228 + $0x60] sm:$0xff] %vm781, %v777
      %795 = vst.msk [vmem:[%s228 + $0x68] sm:$0xff] %vm781, %v778
      %796 = vst.msk [vmem:[%s228 + $0x70] sm:$0xff] %vm781, %v779
      %797 = vst.msk [vmem:[%s228 + $0x78] sm:$0xff] %vm781, %v780
      %s798 = smul.u32 16, %s18
      %p799 = scmp.lt.s32.totalorder %s798, 31
      %s800 = scalar_select %p799, %s798, 31
      %s801 = smul.addr %s800, 8
      %s802 = scalar_lea.vmem %s5, %s801
      // Predicated region
      $region41: #{ffnn_forward.1} parent=39 // pred_check
        %p803 = pneg %p146
      $region42: #{ffnn_forward.1} parent=39 // pred_check_branch
        %805 = sbr.rel (%p803) target = $region44
      $region43: #{ffnn_forward.1} parent=39 // pred_region
        %s806 = smul.u32 16, %s18
      $region44: #{ffnn_forward.1} parent=39 // pred_fallthru
        _
    $region40: #{ffnn_forward.1} parent=5 // pred_fallthru
      _
    %p807 = scmp.le.s32.totalorder 2, %s13
    // Predicated region
    $region45: #{ffnn_forward.1} parent=5 // pred_check
      %p808 = pneg %p807
    $region46: #{ffnn_forward.1} parent=5 // pred_check_branch
      %810 = sbr.rel (%p808) target = $region48
    $region47: #{ffnn_forward.1} parent=5 // pred_region
      %s811 = ssub.s32 %s13, 2
      // Predicated region
      $region49: #{ffnn_forward.1} parent=47 // pred_check
        %p812 = pneg %p152
      $region50: #{ffnn_forward.1} parent=47 // pred_check_branch
        %814 = sbr.rel (%p812) target = $region52
      $region51: #{ffnn_forward.1} parent=47 // pred_region
        %s815 = smul.u32 16, %s19
        %p816 = scmp.lt.s32.totalorder %s815, 31
        %s817 = scalar_select %p816, %s815, 31
        %s818 = smul.addr %s817, 8
        %s819 = scalar_lea.vmem %s5, %s818
      $region52: #{ffnn_forward.1} parent=47 // pred_fallthru
        _
    $region48: #{ffnn_forward.1} parent=5 // pred_fallthru
      _
  $region6: #{ffnn_forward.1} parent=0 // loop_footer
    %s17 = sadd.s32 1, %s13
  $region7: #{ffnn_forward.1} parent=0 // loop_footer_branch
    %12 = sbr.rel target = $region3
  $region8: #{ffnn_forward.1} parent=0 // loop_exit
    _

</llo_original>
